<compile_context>
chip_gen: v7x
topology: tpu7x:2x2x1
jax: 0.10.0
libtpu: 0.0.40
codegen_flags: <defaults>
</compile_context>

<pallas_src>
import functools

import jax
import jax.numpy as jnp
from jax.experimental import pallas as pl
from jax.experimental.pallas import tpu as pltpu


def _memae_kernel(x_ref, wet_ref, be_ref, mem_ref, memwdt_ref, bd_ref,
                  out_ref, att_ref, *, shrink_thres):
    eps_shrink = 1e-12   # eps used inside hard_shrink_relu
    eps_norm = 1e-12     # eps used by F.normalize(p=1)

    x = x_ref[...]                                             # (C_in, Tt) f32

    # ---- encoder: 1x1 conv (per-token linear) + ReLU (channel-major) ----
    # f = We^T @ x + be  -> (fea_dim, Tt)
    f = jnp.dot(wet_ref[...], x, preferred_element_type=jnp.float32) + be_ref[...]
    f = jnp.maximum(f, 0.0)

    # ---- memory addressing ----
    # sim = Mem @ f -> (mem_dim, Tt); softmax over the memory-slot (sublane) axis
    sim = jnp.dot(mem_ref[...], f, preferred_element_type=jnp.float32)
    sim_max = jnp.max(sim, axis=0, keepdims=True)
    e = jnp.exp(sim - sim_max)
    denom = jnp.sum(e, axis=0, keepdims=True)
    att = e * pl.reciprocal(denom, approx=True)

    # hard shrinkage (MemAE hard_shrink_relu) + L1 re-normalization
    if shrink_thres > 0.0:
        shifted = att - shrink_thres
        att = (jnp.maximum(shifted, 0.0) * att) * pl.reciprocal(
            jnp.abs(shifted) + eps_shrink, approx=True)
        l1 = jnp.maximum(jnp.sum(jnp.abs(att), axis=0, keepdims=True), eps_norm)
        att = att * pl.reciprocal(l1, approx=True)

    # ---- fused memory readout + decoder (1x1 conv) ----
    # y = (Mem @ Wd)^T @ att + bd  -> (C_in, Tt)
    y = jnp.dot(memwdt_ref[...], att, preferred_element_type=jnp.float32) + bd_ref[...]

    out_ref[...] = y.astype(out_ref.dtype)
    att_ref[...] = att.astype(att_ref.dtype)


def _pick_token_tile(hw, requested, max_tile=2048):
    """Largest lane-dense tile that divides H*W (or the whole H*W)."""
    if requested is not None:
        tile = requested
    elif hw <= max_tile:
        tile = hw
    else:
        tile = None
        for cand in range(max_tile, 127, -128):
            if hw % cand == 0:
                tile = cand
                break
        if tile is None:          # no multiple-of-128 divisor: take the whole row
            tile = hw
    assert hw % tile == 0, "token tile must divide H*W"
    assert tile == hw or tile % 128 == 0, "partial tiles must be multiples of 128 lanes"
    return tile


def memae_forward(x_nchw, params, *, shrink_thres=0.0025, token_tile=None,
                  att_dtype=jnp.float32):
    """x_nchw: (N, C_in, H, W) float32.  Returns (output NCHW, att (N, mem_dim, H, W))."""
    we, be, mem, wd, bd = (params["we"], params["be"], params["mem"],
                           params["wd"], params["bd"])
    N, C_in, H, W = x_nchw.shape
    fea_dim = we.shape[1]
    mem_dim = mem.shape[0]
    HW = H * W

    tt = _pick_token_tile(HW, token_tile)

    # Channel-major per batch: (N, C_in, HW) -- pure reshape, no transpose needed,
    # and outputs reshape straight back to NCHW.
    x_cm = x_nchw.reshape(N, C_in, HW)

    # Host-side (tiny) parameter preprocessing:
    we_t = we.T                                   # (fea_dim, C_in)
    be_col = be.reshape(fea_dim, 1)               # (fea_dim, 1)
    mem_wd_t = (mem @ wd).T                       # (C_in, mem_dim)  -- decoder folded in
    bd_col = bd.reshape(C_in, 1)                  # (C_in, 1)

    kernel = functools.partial(_memae_kernel, shrink_thres=float(shrink_thres))

    grid = (N, HW // tt)
    out_cm, att_cm = pl.pallas_call(
        kernel,
        out_shape=(
            jax.ShapeDtypeStruct((N, C_in, HW), jnp.float32),
            jax.ShapeDtypeStruct((N, mem_dim, HW), att_dtype),
        ),
        grid_spec=pltpu.PrefetchScalarGridSpec(
            num_scalar_prefetch=0,
            grid=grid,
            in_specs=[
                pl.BlockSpec((None, C_in, tt), lambda n, t: (n, 0, t)),   # x (batch-sliced)
                pl.BlockSpec((fea_dim, C_in), lambda n, t: (0, 0)),       # enc weight^T
                pl.BlockSpec((fea_dim, 1), lambda n, t: (0, 0)),          # enc bias (col)
                pl.BlockSpec((mem_dim, fea_dim), lambda n, t: (0, 0)),    # memory
                pl.BlockSpec((C_in, mem_dim), lambda n, t: (0, 0)),       # (mem @ wd)^T
                pl.BlockSpec((C_in, 1), lambda n, t: (0, 0)),             # dec bias (col)
            ],
            out_specs=[
                pl.BlockSpec((None, C_in, tt), lambda n, t: (n, 0, t)),
                pl.BlockSpec((None, mem_dim, tt), lambda n, t: (n, 0, t)),
            ],
        ),
        compiler_params=pltpu.CompilerParams(
            dimension_semantics=("parallel", "parallel"),
            vmem_limit_bytes=32 * 1024 * 1024,   # raise v5e's 16 MiB default; safe on v6e/v7x
        ),
    )(x_cm, we_t, be_col, mem, mem_wd_t, bd_col)

    output = out_cm.reshape(N, C_in, H, W)
    att = att_cm.reshape(N, mem_dim, H, W)
    return output, att


def init_params(key, c_in, fea_dim, mem_dim):
    """Deterministic synthetic parameter init (shapes follow the module's __init__)."""
    k1, k2, k3, k4, k5 = jax.random.split(key, 5)
    we = jax.random.normal(k1, (c_in, fea_dim), jnp.float32) * (1.0 / jnp.sqrt(c_in))
    be = jax.random.normal(k2, (1, fea_dim), jnp.float32) * 0.01
    # MemModule memory weight: (mem_dim, fea_dim), kaiming-ish uniform
    mem = jax.random.uniform(k3, (mem_dim, fea_dim), jnp.float32,
                             minval=-1.0, maxval=1.0) / jnp.sqrt(fea_dim)
    wd = jax.random.normal(k4, (fea_dim, c_in), jnp.float32) * (1.0 / jnp.sqrt(fea_dim))
    bd = jax.random.normal(k5, (1, c_in), jnp.float32) * 0.01
    return {"we": we, "be": be, "mem": mem, "wd": wd, "bd": bd}


def memae_reference(x_nchw, params, shrink_thres=0.0025):
    """Pure-JAX reference of the same forward pass (for a sanity check)."""
    we, be, mem, wd, bd = (params["we"], params["be"], params["mem"],
                           params["wd"], params["bd"])
    N, C_in, H, W = x_nchw.shape
    x_tok = jnp.transpose(x_nchw, (0, 2, 3, 1)).reshape(-1, C_in)
    f = jnp.maximum(x_tok @ we + be, 0.0)
    att = jax.nn.softmax(f @ mem.T, axis=-1)
    if shrink_thres > 0.0:
        s = att - shrink_thres
        att = jnp.maximum(s, 0.0) * att / (jnp.abs(s) + 1e-12)
        att = att / jnp.maximum(jnp.sum(jnp.abs(att), -1, keepdims=True), 1e-12)
    y = (att @ mem) @ wd + bd
    out = jnp.transpose(y.reshape(N, H, W, C_in), (0, 3, 1, 2))
    att_m = jnp.transpose(att.reshape(N, H, W, -1), (0, 3, 1, 2))
    return out, att_m


if __name__ == "__main__":
    # num_targets=1, fea_dim=32, mem_dim=64, shrink_thres=0.0025,
    # use_cosine_similarity=False
    N, C_in, H, W = 2, 4, 16, 16
    fea_dim, mem_dim = 32, 64
    shrink_thres = 0.0025

    key = jax.random.PRNGKey(0)
    kx, kp = jax.random.split(key)
    x = jax.random.normal(kx, (N, C_in, H, W), jnp.float32)
    params = init_params(kp, C_in, fea_dim, mem_dim)

    out, att = memae_forward(x, params, shrink_thres=shrink_thres)
    out = jax.block_until_ready(out)
    att = jax.block_until_ready(att)

    out_ref, att_ref = memae_reference(x, params, shrink_thres)
    assert out.shape == (N, C_in, H, W)
    assert att.shape == (N, mem_dim, H, W)
    # Tolerance is 2e-3 (not 1e-4) because the kernel uses EUP approximate
    # reciprocals for the softmax / shrink / L1-renorm denominators.
    assert jnp.allclose(out, out_ref, atol=2e-3, rtol=2e-3)
    assert jnp.allclose(att, att_ref, atol=2e-3, rtol=2e-3)

    print("KERNEL_OK")
</pallas_src>

<mosaic_0001>
module attributes {stable_mosaic.version = 11 : i64} {
  func.func @_memae_kernel(%arg0: i32, %arg1: i32, %arg2: memref<1x4x256xf32, #tpu.memory_space<vmem>>, %arg3: memref<32x4xf32, #tpu.memory_space<vmem>>, %arg4: memref<32x1xf32, #tpu.memory_space<vmem>>, %arg5: memref<64x32xf32, #tpu.memory_space<vmem>>, %arg6: memref<4x64xf32, #tpu.memory_space<vmem>>, %arg7: memref<4x1xf32, #tpu.memory_space<vmem>>, %arg8: memref<1x4x256xf32, #tpu.memory_space<vmem>>, %arg9: memref<1x64x256xf32, #tpu.memory_space<vmem>>) attributes {dimension_semantics = [#tpu.dimension_semantics<parallel>, #tpu.dimension_semantics<parallel>], iteration_bounds = array<i64: 2, 1>, scalar_prefetch = 0 : i64, scratch_operands = 0 : i64, tpu.core_type = #tpu.core_type<tc>, window_params = [{transform_indices = @transform_0, window_bounds = array<i64: 1, 4, 256>}, {pipeline_mode = #tpu.pipeline_mode<synchronous>, transform_indices = @transform_1, window_bounds = array<i64: 32, 4>}, {pipeline_mode = #tpu.pipeline_mode<synchronous>, transform_indices = @transform_2, window_bounds = array<i64: 32, 1>}, {pipeline_mode = #tpu.pipeline_mode<synchronous>, transform_indices = @transform_3, window_bounds = array<i64: 64, 32>}, {pipeline_mode = #tpu.pipeline_mode<synchronous>, transform_indices = @transform_4, window_bounds = array<i64: 4, 64>}, {pipeline_mode = #tpu.pipeline_mode<synchronous>, transform_indices = @transform_5, window_bounds = array<i64: 4, 1>}, {transform_indices = @transform_6, window_bounds = array<i64: 1, 4, 256>}, {transform_indices = @transform_7, window_bounds = array<i64: 1, 64, 256>}]} {
    %c0 = arith.constant 0 : index
    %c0_0 = arith.constant 0 : index
    %c0_1 = arith.constant 0 : index
    %0 = vector.load %arg2[%c0, %c0_0, %c0_1] : memref<1x4x256xf32, #tpu.memory_space<vmem>>, vector<1x4x256xf32>
    %1 = vector.shape_cast %0 : vector<1x4x256xf32> to vector<4x256xf32>
    %c0_2 = arith.constant 0 : index
    %c0_3 = arith.constant 0 : index
    %2 = vector.load %arg3[%c0_2, %c0_3] : memref<32x4xf32, #tpu.memory_space<vmem>>, vector<32x4xf32>
    %cst = arith.constant dense<0.000000e+00> : vector<32x256xf32>
    %3 = tpu.matmul %2, %1, %cst {dimension_numbers = #tpu.dot_dimension_numbers<[1], [0], [0], [1], [0, 0, 1, 1], [], []>} : vector<32x4xf32>, vector<4x256xf32>, vector<32x256xf32> -> vector<32x256xf32>
    %c0_4 = arith.constant 0 : index
    %c0_5 = arith.constant 0 : index
    %4 = vector.load %arg4[%c0_4, %c0_5] : memref<32x1xf32, #tpu.memory_space<vmem>>, vector<32x1xf32>
    %5 = vector.broadcast %4 : vector<32x1xf32> to vector<32x256xf32>
    %6 = arith.addf %3, %5 : vector<32x256xf32>
    %cst_6 = arith.constant 0.000000e+00 : f32
    %7 = vector.broadcast %cst_6 : f32 to vector<32x256xf32>
    %8 = arith.maximumf %6, %7 : vector<32x256xf32>
    %c0_7 = arith.constant 0 : index
    %c0_8 = arith.constant 0 : index
    %9 = vector.load %arg5[%c0_7, %c0_8] : memref<64x32xf32, #tpu.memory_space<vmem>>, vector<64x32xf32>
    %cst_9 = arith.constant dense<0.000000e+00> : vector<64x256xf32>
    %10 = tpu.matmul %9, %8, %cst_9 {dimension_numbers = #tpu.dot_dimension_numbers<[1], [0], [0], [1], [0, 0, 1, 1], [], []>} : vector<64x32xf32>, vector<32x256xf32>, vector<64x256xf32> -> vector<64x256xf32>
    %cst_10 = arith.constant dense<0xFF800000> : vector<256xf32>
    %11 = vector.multi_reduction <maximumf>, %10, %cst_10 [0] : vector<64x256xf32> to vector<256xf32>
    %12 = vector.shape_cast %11 : vector<256xf32> to vector<1x256xf32>
    %13 = vector.broadcast %12 : vector<1x256xf32> to vector<64x256xf32>
    %14 = arith.subf %10, %13 : vector<64x256xf32>
    %15 = math.exp %14 : vector<64x256xf32>
    %cst_11 = arith.constant dense<0.000000e+00> : vector<256xf32>
    %16 = vector.multi_reduction <add>, %15, %cst_11 [0] : vector<64x256xf32> to vector<256xf32>
    %17 = vector.shape_cast %16 : vector<256xf32> to vector<1x256xf32>
    %18 = tpu.reciprocal %17 {approx = true} : vector<1x256xf32> -> vector<1x256xf32>
    %19 = vector.broadcast %18 : vector<1x256xf32> to vector<64x256xf32>
    %20 = arith.mulf %15, %19 : vector<64x256xf32>
    %cst_12 = arith.constant 2.500000e-03 : f32
    %21 = vector.broadcast %cst_12 : f32 to vector<64x256xf32>
    %22 = arith.subf %20, %21 : vector<64x256xf32>
    %cst_13 = arith.constant 0.000000e+00 : f32
    %23 = vector.broadcast %cst_13 : f32 to vector<64x256xf32>
    %24 = arith.maximumf %22, %23 : vector<64x256xf32>
    %25 = arith.mulf %24, %20 : vector<64x256xf32>
    %26 = math.absf %22 : vector<64x256xf32>
    %cst_14 = arith.constant 9.99999996E-13 : f32
    %27 = vector.broadcast %cst_14 : f32 to vector<64x256xf32>
    %28 = arith.addf %26, %27 : vector<64x256xf32>
    %29 = tpu.reciprocal %28 {approx = true} : vector<64x256xf32> -> vector<64x256xf32>
    %30 = arith.mulf %25, %29 : vector<64x256xf32>
    %31 = math.absf %30 : vector<64x256xf32>
    %cst_15 = arith.constant dense<0.000000e+00> : vector<256xf32>
    %32 = vector.multi_reduction <add>, %31, %cst_15 [0] : vector<64x256xf32> to vector<256xf32>
    %33 = vector.shape_cast %32 : vector<256xf32> to vector<1x256xf32>
    %cst_16 = arith.constant 9.99999996E-13 : f32
    %34 = vector.broadcast %cst_16 : f32 to vector<1x256xf32>
    %35 = arith.maximumf %33, %34 : vector<1x256xf32>
    %36 = tpu.reciprocal %35 {approx = true} : vector<1x256xf32> -> vector<1x256xf32>
    %37 = vector.broadcast %36 : vector<1x256xf32> to vector<64x256xf32>
    %38 = arith.mulf %30, %37 : vector<64x256xf32>
    %c0_17 = arith.constant 0 : index
    %c0_18 = arith.constant 0 : index
    %39 = vector.load %arg6[%c0_17, %c0_18] : memref<4x64xf32, #tpu.memory_space<vmem>>, vector<4x64xf32>
    %cst_19 = arith.constant dense<0.000000e+00> : vector<4x256xf32>
    %40 = tpu.matmul %39, %38, %cst_19 {dimension_numbers = #tpu.dot_dimension_numbers<[1], [0], [0], [1], [0, 0, 1, 1], [], []>} : vector<4x64xf32>, vector<64x256xf32>, vector<4x256xf32> -> vector<4x256xf32>
    %c0_20 = arith.constant 0 : index
    %c0_21 = arith.constant 0 : index
    %41 = vector.load %arg7[%c0_20, %c0_21] : memref<4x1xf32, #tpu.memory_space<vmem>>, vector<4x1xf32>
    %42 = vector.broadcast %41 : vector<4x1xf32> to vector<4x256xf32>
    %43 = arith.addf %40, %42 : vector<4x256xf32>
    %c0_22 = arith.constant 0 : index
    %c0_23 = arith.constant 0 : index
    %c0_24 = arith.constant 0 : index
    %44 = vector.load %arg8[%c0_22, %c0_23, %c0_24] : memref<1x4x256xf32, #tpu.memory_space<vmem>>, vector<1x4x256xf32>
    %45 = vector.shape_cast %44 : vector<1x4x256xf32> to vector<4x256xf32>
    %46 = vector.shape_cast %43 : vector<4x256xf32> to vector<1x4x256xf32>
    tpu.vector_store %arg8[%c0_22, %c0_23, %c0_24], %46 {strides = array<i32>} : memref<1x4x256xf32, #tpu.memory_space<vmem>>, vector<1x4x256xf32>,
    %c0_25 = arith.constant 0 : index
    %c0_26 = arith.constant 0 : index
    %c0_27 = arith.constant 0 : index
    %47 = vector.load %arg9[%c0_25, %c0_26, %c0_27] : memref<1x64x256xf32, #tpu.memory_space<vmem>>, vector<1x64x256xf32>
    %48 = vector.shape_cast %47 : vector<1x64x256xf32> to vector<64x256xf32>
    %49 = vector.shape_cast %38 : vector<64x256xf32> to vector<1x64x256xf32>
    tpu.vector_store %arg9[%c0_25, %c0_26, %c0_27], %49 {strides = array<i32>} : memref<1x64x256xf32, #tpu.memory_space<vmem>>, vector<1x64x256xf32>,
    return
  }
  func.func @transform_0(%arg0: i32, %arg1: i32) -> (i32, i32, i32) {
    %c0_i32 = arith.constant 0 : i32
    %c0_i32_0 = arith.constant 0 : i32
    return %arg0, %c0_i32, %arg1 : i32, i32, i32
  }
  func.func @transform_1(%arg0: i32, %arg1: i32) -> (i32, i32) {
    %c0_i32 = arith.constant 0 : i32
    %c0_i32_0 = arith.constant 0 : i32
    %c0_i32_1 = arith.constant 0 : i32
    return %c0_i32, %c0_i32_0 : i32, i32
  }
  func.func @transform_2(%arg0: i32, %arg1: i32) -> (i32, i32) {
    %c0_i32 = arith.constant 0 : i32
    %c0_i32_0 = arith.constant 0 : i32
    %c0_i32_1 = arith.constant 0 : i32
    return %c0_i32, %c0_i32_0 : i32, i32
  }
  func.func @transform_3(%arg0: i32, %arg1: i32) -> (i32, i32) {
    %c0_i32 = arith.constant 0 : i32
    %c0_i32_0 = arith.constant 0 : i32
    %c0_i32_1 = arith.constant 0 : i32
    return %c0_i32, %c0_i32_0 : i32, i32
  }
  func.func @transform_4(%arg0: i32, %arg1: i32) -> (i32, i32) {
    %c0_i32 = arith.constant 0 : i32
    %c0_i32_0 = arith.constant 0 : i32
    %c0_i32_1 = arith.constant 0 : i32
    return %c0_i32, %c0_i32_0 : i32, i32
  }
  func.func @transform_5(%arg0: i32, %arg1: i32) -> (i32, i32) {
    %c0_i32 = arith.constant 0 : i32
    %c0_i32_0 = arith.constant 0 : i32
    %c0_i32_1 = arith.constant 0 : i32
    return %c0_i32, %c0_i32_0 : i32, i32
  }
  func.func @transform_6(%arg0: i32, %arg1: i32) -> (i32, i32, i32) {
    %c0_i32 = arith.constant 0 : i32
    %c0_i32_0 = arith.constant 0 : i32
    return %arg0, %c0_i32, %arg1 : i32, i32, i32
  }
  func.func @transform_7(%arg0: i32, %arg1: i32) -> (i32, i32, i32) {
    %c0_i32 = arith.constant 0 : i32
    %c0_i32_0 = arith.constant 0 : i32
    return %arg0, %c0_i32, %arg1 : i32, i32, i32
  }
}

</mosaic_0001>

<llo_original>
// kernel: tpu_custom_call.1
$region0: #{tpu_custom_call.1}
  #allocation0 [shape = 'u32[]', space=smem, size = 0x4, offset = 0x4, fixed_abs, tag = 'smem constant byte address 0x4 - core index']
  #allocation1 [shape = 'u32[144,128]{1,0:T(1,128)}', space=vmem, size = 0x12000, scoped, tag = 'internal scratch']
  %s0 = inlined_call_operand.vmem [shape: f32[2,4,256], index: 0, kind: input, shape index: {}]
  %s1 = inlined_call_operand.vmem [shape: f32[32,4], index: 1, kind: input, shape index: {}]
  %s2 = inlined_call_operand.vmem [shape: f32[32,1], index: 2, kind: input, shape index: {}]
  %s3 = inlined_call_operand.vmem [shape: f32[64,32], index: 3, kind: input, shape index: {}]
  %s4 = inlined_call_operand.vmem [shape: f32[4,64], index: 4, kind: input, shape index: {}]
  %s5 = inlined_call_operand.vmem [shape: f32[4,1], index: 5, kind: input, shape index: {}]
  %s6 = inlined_call_operand.hbm [shape: f32[2,4,256], index: 6, kind: output, shape index: {0}]
  %s7 = inlined_call_operand.hbm [shape: f32[2,64,256], index: 7, kind: output, shape index: {1}]
  %8 = xla_tuple %s6, %s7
  %s9 = sld [smem:[#allocation0]]
  $region65: #{tpu_custom_call.1} parent=0
    _
  %s11 = ssub.s32 1, %s9
  %s12 = scalar_select 0, %s11, %s9
  $region1: #{tpu_custom_call.1} parent=0
    #allocation2 [shape = 'u8[8192]{0}', space=vmem, size = 0x2000, scoped, tag = 'output window, operand 0']
    #allocation3 [shape = 's32[2]{0}', space=sflag, size = 0x8, scoped, tag = 'scoped memory for tpu_custom_call.1']
    #allocation4 [shape = 'u8[131072]{0}', space=vmem, size = 0x20000, scoped, tag = 'output window, operand 1']
    #allocation5 [shape = 's32[2]{0}', space=sflag, size = 0x8, scoped, tag = 'scoped memory for tpu_custom_call.1']
    %13 = vsyncpa [#allocation3], 0
    %s14 = scalar_lea.sflag [#allocation3], 1
    %15 = vsyncpa %s14, 0
    %16 = vsyncpa [#allocation5], 0
    %s17 = scalar_lea.sflag [#allocation5], 1
    %18 = vsyncpa %s17, 0
    loop: start=0, step=1, limit=4
    $region2: #{tpu_custom_call.1} parent=1 // loop_pre_header
      _
    $region3: #{tpu_custom_call.1} parent=1 // loop_header
      %s20 = sphi 0, %s24
      %p21 = scmp.ge.s32.totalorder %s20, 4
      %s27 = sphi 0, %s39
      %s28 = sphi 0, %s35
      %s29 = sphi 0, %s27
      %s30 = sphi 0, %s28
      %s31 = sphi 0, %s29
      %s32 = sphi 0, %s30
      %s44 = sphi 0, %s46
      %s47 = sphi 0, %s44
      %s48 = sphi 0, %s47
      %s64 = sphi 0, %s48
      %s68 = sphi 0, %s68
      %s70 = sphi 0, %s68
      %s71 = sphi 0, %s70
      %s85 = sphi 0, %s71
      %s89 = sphi 0, %s89
      %s91 = sphi 0, %s89
      %s92 = sphi 0, %s91
      %s106 = sphi 0, %s92
      %s110 = sphi 0, %s110
      %s112 = sphi 0, %s110
      %s113 = sphi 0, %s112
      %s127 = sphi 0, %s113
      %s131 = sphi 0, %s131
      %s133 = sphi 0, %s131
      %s134 = sphi 0, %s133
      %s148 = sphi 0, %s134
      %s152 = sphi 0, %s152
      %s154 = sphi 0, %s152
      %s155 = sphi 0, %s154
      %s169 = sphi 0, %s155
      %s177 = sphi 0, %s179
      %s180 = sphi 0, %s177
      %s181 = sphi 0, %s180
      %s197 = sphi 0, %s181
      %s205 = sphi 0, %s207
      %s208 = sphi 0, %s205
      %s209 = sphi 0, %s208
      %s225 = sphi 0, %s209
    $region4: #{tpu_custom_call.1} parent=1 // loop_header_branch
      %23 = sbr.rel (%p21) target = $region8
    $region5: #{tpu_custom_call.1} parent=1 // loop_body
      %s25 = ssub.s32 %s20, 1
      %s26 = ssub.s32 %s20, 2
      %s33 = sadd.s32 1, %s28
      %p34 = scmp.ge.s32.totalorder %s33, 1
      %s35 = scalar_select %p34, 0, %s33
      %s36 = sadd.s32 1, %s27
      %s37 = scalar_select %p34, %s36, %s27
      %p38 = scmp.ge.s32.totalorder %s37, 2
      %s39 = scalar_select %p38, 0, %s37
      %s40 = ssub.s32 %s27, %s39
      %s41 = ssub.s32 %s28, %s35
      %s42 = sor.u32 %s40, %s41
      %p43 = scmp.eq.s32.totalorder %s42, 0
      %s45 = sadd.s32 %s44, 1
      %s46 = scalar_select %p43, %s44, %s45
      %p49 = pneg %p43
      %p50 = scmp.eq.s32.totalorder %s20, 1
      %p51 = por %p49, %p50
      %p52 = scmp.ne.s32.totalorder %s44, %s47
      %p53 = scmp.eq.s32.totalorder %s20, 0
      %p54 = por %p52, %p53
      %p55 = scmp.ne.s32.totalorder %s44, %s47
      %p56 = scmp.eq.s32.totalorder %s25, 1
      %p57 = por %p55, %p56
      %p58 = scmp.ne.s32.totalorder %s47, %s48
      %p59 = scmp.eq.s32.totalorder %s25, 0
      %p60 = por %p58, %p59
      %p61 = scmp.ne.s32.totalorder %s47, %s48
      %p62 = scmp.eq.s32.totalorder %s26, 1
      %p63 = por %p61, %p62
      %p65 = scmp.ne.s32.totalorder %s48, %s64
      %p66 = scmp.eq.s32.totalorder %s26, 0
      %p67 = por %p65, %p66
      %s69 = sadd.s32 %s68, 1
      %p72 = scmp.eq.s32.totalorder %s20, 1
      %p73 = scmp.ne.s32.totalorder %s68, %s70
      %p74 = scmp.eq.s32.totalorder %s20, 0
      %p75 = por %p73, %p74
      %p76 = scmp.ne.s32.totalorder %s68, %s70
      %p77 = scmp.eq.s32.totalorder %s25, 1
      %p78 = por %p76, %p77
      %p79 = scmp.ne.s32.totalorder %s70, %s71
      %p80 = scmp.eq.s32.totalorder %s25, 0
      %p81 = por %p79, %p80
      %p82 = scmp.ne.s32.totalorder %s70, %s71
      %p83 = scmp.eq.s32.totalorder %s26, 1
      %p84 = por %p82, %p83
      %p86 = scmp.ne.s32.totalorder %s71, %s85
      %p87 = scmp.eq.s32.totalorder %s26, 0
      %p88 = por %p86, %p87
      %s90 = sadd.s32 %s89, 1
      %p93 = scmp.eq.s32.totalorder %s20, 1
      %p94 = scmp.ne.s32.totalorder %s89, %s91
      %p95 = scmp.eq.s32.totalorder %s20, 0
      %p96 = por %p94, %p95
      %p97 = scmp.ne.s32.totalorder %s89, %s91
      %p98 = scmp.eq.s32.totalorder %s25, 1
      %p99 = por %p97, %p98
      %p100 = scmp.ne.s32.totalorder %s91, %s92
      %p101 = scmp.eq.s32.totalorder %s25, 0
      %p102 = por %p100, %p101
      %p103 = scmp.ne.s32.totalorder %s91, %s92
      %p104 = scmp.eq.s32.totalorder %s26, 1
      %p105 = por %p103, %p104
      %p107 = scmp.ne.s32.totalorder %s92, %s106
      %p108 = scmp.eq.s32.totalorder %s26, 0
      %p109 = por %p107, %p108
      %s111 = sadd.s32 %s110, 1
      %p114 = scmp.eq.s32.totalorder %s20, 1
      %p115 = scmp.ne.s32.totalorder %s110, %s112
      %p116 = scmp.eq.s32.totalorder %s20, 0
      %p117 = por %p115, %p116
      %p118 = scmp.ne.s32.totalorder %s110, %s112
      %p119 = scmp.eq.s32.totalorder %s25, 1
      %p120 = por %p118, %p119
      %p121 = scmp.ne.s32.totalorder %s112, %s113
      %p122 = scmp.eq.s32.totalorder %s25, 0
      %p123 = por %p121, %p122
      %p124 = scmp.ne.s32.totalorder %s112, %s113
      %p125 = scmp.eq.s32.totalorder %s26, 1
      %p126 = por %p124, %p125
      %p128 = scmp.ne.s32.totalorder %s113, %s127
      %p129 = scmp.eq.s32.totalorder %s26, 0
      %p130 = por %p128, %p129
      %s132 = sadd.s32 %s131, 1
      %p135 = scmp.eq.s32.totalorder %s20, 1
      %p136 = scmp.ne.s32.totalorder %s131, %s133
      %p137 = scmp.eq.s32.totalorder %s20, 0
      %p138 = por %p136, %p137
      %p139 = scmp.ne.s32.totalorder %s131, %s133
      %p140 = scmp.eq.s32.totalorder %s25, 1
      %p141 = por %p139, %p140
      %p142 = scmp.ne.s32.totalorder %s133, %s134
      %p143 = scmp.eq.s32.totalorder %s25, 0
      %p144 = por %p142, %p143
      %p145 = scmp.ne.s32.totalorder %s133, %s134
      %p146 = scmp.eq.s32.totalorder %s26, 1
      %p147 = por %p145, %p146
      %p149 = scmp.ne.s32.totalorder %s134, %s148
      %p150 = scmp.eq.s32.totalorder %s26, 0
      %p151 = por %p149, %p150
      %s153 = sadd.s32 %s152, 1
      %p156 = scmp.eq.s32.totalorder %s20, 1
      %p157 = scmp.ne.s32.totalorder %s152, %s154
      %p158 = scmp.eq.s32.totalorder %s20, 0
      %p159 = por %p157, %p158
      %p160 = scmp.ne.s32.totalorder %s152, %s154
      %p161 = scmp.eq.s32.totalorder %s25, 1
      %p162 = por %p160, %p161
      %p163 = scmp.ne.s32.totalorder %s154, %s155
      %p164 = scmp.eq.s32.totalorder %s25, 0
      %p165 = por %p163, %p164
      %p166 = scmp.ne.s32.totalorder %s154, %s155
      %p167 = scmp.eq.s32.totalorder %s26, 1
      %p168 = por %p166, %p167
      %p170 = scmp.ne.s32.totalorder %s155, %s169
      %p171 = scmp.eq.s32.totalorder %s26, 0
      %p172 = por %p170, %p171
      %s173 = ssub.s32 %s27, %s39
      %s174 = ssub.s32 %s28, %s35
      %s175 = sor.u32 %s173, %s174
      %p176 = scmp.eq.s32.totalorder %s175, 0
      %s178 = sadd.s32 %s177, 1
      %s179 = scalar_select %p176, %s177, %s178
      %p182 = pneg %p176
      %p183 = scmp.eq.s32.totalorder %s20, 1
      %p184 = por %p182, %p183
      %p185 = scmp.ne.s32.totalorder %s177, %s180
      %p186 = scmp.eq.s32.totalorder %s20, 0
      %p187 = por %p185, %p186
      %p188 = scmp.ne.s32.totalorder %s177, %s180
      %p189 = scmp.eq.s32.totalorder %s25, 1
      %p190 = por %p188, %p189
      %p191 = scmp.ne.s32.totalorder %s180, %s181
      %p192 = scmp.eq.s32.totalorder %s25, 0
      %p193 = por %p191, %p192
      %p194 = scmp.ne.s32.totalorder %s180, %s181
      %p195 = scmp.eq.s32.totalorder %s26, 1
      %p196 = por %p194, %p195
      %p198 = scmp.ne.s32.totalorder %s181, %s197
      %p199 = scmp.eq.s32.totalorder %s26, 0
      %p200 = por %p198, %p199
      %s201 = ssub.s32 %s27, %s39
      %s202 = ssub.s32 %s28, %s35
      %s203 = sor.u32 %s201, %s202
      %p204 = scmp.eq.s32.totalorder %s203, 0
      %s206 = sadd.s32 %s205, 1
      %s207 = scalar_select %p204, %s205, %s206
      %p210 = pneg %p204
      %p211 = scmp.eq.s32.totalorder %s20, 1
      %p212 = por %p210, %p211
      %p213 = scmp.ne.s32.totalorder %s205, %s208
      %p214 = scmp.eq.s32.totalorder %s20, 0
      %p215 = por %p213, %p214
      %p216 = scmp.ne.s32.totalorder %s205, %s208
      %p217 = scmp.eq.s32.totalorder %s25, 1
      %p218 = por %p216, %p217
      %p219 = scmp.ne.s32.totalorder %s208, %s209
      %p220 = scmp.eq.s32.totalorder %s25, 0
      %p221 = por %p219, %p220
      %p222 = scmp.ne.s32.totalorder %s208, %s209
      %p223 = scmp.eq.s32.totalorder %s26, 1
      %p224 = por %p222, %p223
      %p226 = scmp.ne.s32.totalorder %s209, %s225
      %p227 = scmp.eq.s32.totalorder %s26, 0
      %p228 = por %p226, %p227
      %p229 = scmp.le.s32.totalorder 1, %s20
      %p230 = scmp.lt.s32.totalorder %s20, 3
      %p231 = pnand %p229, %p230
      %p232 = pneg %p231
      // Predicated region
      $region9: #{tpu_custom_call.1} parent=5 // pred_check
        _
      $region10: #{tpu_custom_call.1} parent=5 // pred_check_branch
        %234 = sbr.rel (%p231) target = $region12
      $region11: #{tpu_custom_call.1} parent=5 // pred_region
        %s235 = ssub.s32 %s20, 1
        // Predicated region
        $region13: #{tpu_custom_call.1} parent=11 // pred_check
          %p236 = pneg %p81
        $region14: #{tpu_custom_call.1} parent=11 // pred_check_branch
          %238 = sbr.rel (%p236) target = $region16
        $region15: #{tpu_custom_call.1} parent=11 // pred_region
          _
        $region16: #{tpu_custom_call.1} parent=11 // pred_fallthru
          _
        // Predicated region
        $region17: #{tpu_custom_call.1} parent=11 // pred_check
          %p239 = pneg %p102
        $region18: #{tpu_custom_call.1} parent=11 // pred_check_branch
          %241 = sbr.rel (%p239) target = $region20
        $region19: #{tpu_custom_call.1} parent=11 // pred_region
          _
        $region20: #{tpu_custom_call.1} parent=11 // pred_fallthru
          _
        // Predicated region
        $region21: #{tpu_custom_call.1} parent=11 // pred_check
          %p242 = pneg %p123
        $region22: #{tpu_custom_call.1} parent=11 // pred_check_branch
          %244 = sbr.rel (%p242) target = $region24
        $region23: #{tpu_custom_call.1} parent=11 // pred_region
          _
        $region24: #{tpu_custom_call.1} parent=11 // pred_fallthru
          _
        // Predicated region
        $region25: #{tpu_custom_call.1} parent=11 // pred_check
          %p245 = pneg %p144
        $region26: #{tpu_custom_call.1} parent=11 // pred_check_branch
          %247 = sbr.rel (%p245) target = $region28
        $region27: #{tpu_custom_call.1} parent=11 // pred_region
          _
        $region28: #{tpu_custom_call.1} parent=11 // pred_fallthru
          _
        // Predicated region
        $region29: #{tpu_custom_call.1} parent=11 // pred_check
          %p248 = pneg %p165
        $region30: #{tpu_custom_call.1} parent=11 // pred_check_branch
          %250 = sbr.rel (%p248) target = $region32
        $region31: #{tpu_custom_call.1} parent=11 // pred_region
          _
        $region32: #{tpu_custom_call.1} parent=11 // pred_fallthru
          _
      $region12: #{tpu_custom_call.1} parent=5 // pred_fallthru
        _
      %p251 = scmp.lt.s32.totalorder %s20, 2
      // Predicated region
      $region33: #{tpu_custom_call.1} parent=5 // pred_check
        %p252 = pneg %p251
      $region34: #{tpu_custom_call.1} parent=5 // pred_check_branch
        %254 = sbr.rel (%p252) target = $region36
      $region35: #{tpu_custom_call.1} parent=5 // pred_region
        // Predicated region
        $region37: #{tpu_custom_call.1} parent=35 // pred_check
          %p255 = pneg %p54
        $region38: #{tpu_custom_call.1} parent=35 // pred_check_branch
          %257 = sbr.rel (%p255) target = $region40
        $region39: #{tpu_custom_call.1} parent=35 // pred_region
          %s258 = smul.u32 2, %s28
          %p259 = scmp.lt.s32.totalorder %s27, 1
          %s260 = scalar_select %p259, %s27, 1
          %p261 = scmp.lt.s32.totalorder %s258, 1
          %s262 = scalar_select %p261, %s258, 1
          %s263 = smul.addr %s260, 2
          %s264 = sadd.s32 %s262, %s263
          %s265 = smul.addr %s264, 4
          %s266 = scalar_lea.vmem %s0, %s265
          %s267 = smul.u32 2, %s28
        $region40: #{tpu_custom_call.1} parent=35 // pred_fallthru
          _
      $region36: #{tpu_custom_call.1} parent=5 // pred_fallthru
        _
      %p268 = scmp.le.s32.totalorder 1, %s20
      %p269 = scmp.lt.s32.totalorder %s20, 3
      %p270 = pnand %p268, %p269
      %p271 = pneg %p270
      // Predicated region
      $region41: #{tpu_custom_call.1} parent=5 // pred_check
        _
      $region42: #{tpu_custom_call.1} parent=5 // pred_check_branch
        %273 = sbr.rel (%p270) target = $region44
      $region43: #{tpu_custom_call.1} parent=5 // pred_region
        %s274 = ssub.s32 %s20, 1
        %s275 = smul.u32 2, %s30
        %p276 = scmp.lt.s32.totalorder %s29, 1
        %s277 = scalar_select %p276, %s29, 1
        %p278 = scmp.lt.s32.totalorder %s275, 1
        %s279 = scalar_select %p278, %s275, 1
        %s280 = smul.addr %s277, 2
        %s281 = sadd.s32 %s279, %s280
        %s282 = smul.addr %s281, 4
        %s283 = scalar_lea.vmem %s0, %s282
        %p284 = pneg %p60
        %p285 = pneg %p57
        %p286 = pneg %p81
        %p287 = pneg %p78
        %p288 = pneg %p102
        %p289 = pneg %p99
        %p290 = pneg %p123
        %p291 = pneg %p120
        %p292 = pneg %p144
        %p293 = pneg %p141
        %p294 = pneg %p165
        %p295 = pneg %p162
        %p296 = pneg %p193
        %p297 = pneg %p190
        %s298 = sand.u32 %s180, 1
        %s299 = scalar_lea.sflag [#allocation3], %s298
        %s300 = sand.u32 %s180, 1
        %s301 = smul.addr %s300, 8
        %s302 = scalar_lea.vmem [#allocation2], %s301
        %p303 = pneg %p221
        %p304 = pneg %p218
        %s305 = sand.u32 %s208, 1
        %s306 = scalar_lea.sflag [#allocation5], %s305
        %s307 = sand.u32 %s208, 1
        %s308 = smul.addr %s307, 128
        %s309 = scalar_lea.vmem [#allocation4], %s308
        %s310 = smul.u32 2, %s30
        %p311 = scmp.lt.s32.totalorder %s29, 1
        %s312 = scalar_select %p311, %s29, 1
        %p313 = scmp.lt.s32.totalorder %s310, 1
        %s314 = scalar_select %p313, %s310, 1
        %s315 = smul.addr %s312, 2
        %s316 = sadd.s32 %s314, %s315
        %s317 = smul.addr %s316, 4
        %s318 = scalar_lea.vmem %s0, %s317
        %s319 = smul.u32 2, %s30
        %s320 = smul.u32 2, %s30
        %s321 = smul.u32 2, %s30
        %v322 = vld [vmem:[%s318] sm:$0xff]
        %v323 = vld [vmem:[%s1] sm:$0xff]
        %v324 = vld [vmem:[%s1 + $0x8] sm:$0xff]
        %v325 = vld [vmem:[%s1 + $0x10] sm:$0xff]
        %v326 = vld [vmem:[%s1 + $0x18] sm:$0xff]
        %v327 = vld [vmem:[%s2] sm:$0xff]
        %v328 = vld [vmem:[%s2 + $0x8] sm:$0xff]
        %v329 = vld [vmem:[%s2 + $0x10] sm:$0xff]
        %v330 = vld [vmem:[%s2 + $0x18] sm:$0xff]
        %332 = vset.pattern.permute.xlu0 0
        %333 = vperm.xlu0 %332, %v327
        %v334 = vpop.permute.xlu0 %333
        %337 = vset.pattern.permute.xlu0 0
        %338 = vperm.xlu0 %337, %v328
        %v339 = vpop.permute.xlu0 %338
        %342 = vset.pattern.permute.xlu0 0
        %343 = vperm.xlu0 %342, %v329
        %v344 = vpop.permute.xlu0 %343
        %347 = vset.pattern.permute.xlu0 0
        %348 = vperm.xlu0 %347, %v330
        %v349 = vpop.permute.xlu0 %348
        %v352 = vcombine.high %v322, %v322
        %vm353 = vcmask 31744
        %v355 = vsel %vm353, %v323, 0
        %v358 = vsel %vm353, %v324, 0
        %v361 = vsel %vm353, %v325, 0
        %v364 = vsel %vm353, %v326, 0
        %vm366 = vcmask 1043456
        %v367 = vsel %vm366, %v322, 0
        %v369 = vsel %vm366, %v352, 0
        %371 = vmatprep.subr.mxu0 %v369
        %372 = vmatpush1.msra.mxu0 %v367
        %373 = vmatprep.subr.mxu0 0.0
        %374 = vmatpush1.msra.mxu0 0.0
        %375 = vmatprep.subr.mxu0 0.0
        %376 = vmatpush1.msra.mxu0 0.0
        %377 = vmatprep.subr.mxu0 0.0
        %378 = vmatpush1.msra.mxu0 0.0
        %379 = vmatprep.subr.mxu0 0.0
        %380 = vmatpush1.msra.mxu0 0.0
        %381 = vmatprep.subr.mxu0 0.0
        %382 = vmatpush1.msra.mxu0 0.0
        %383 = vmatprep.subr.mxu0 0.0
        %384 = vmatpush1.msra.mxu0 0.0
        %385 = vmatprep.subr.mxu0 0.0
        %386 = vmatpush1.msra.mxu0 0.0
        %387 = vmatprep.subr.mxu0 0.0
        %388 = vmatpush1.msra.mxu0 0.0
        %389 = vmatprep.subr.mxu0 0.0
        %390 = vmatpush1.msra.mxu0 0.0
        %391 = vmatprep.subr.mxu0 0.0
        %392 = vmatpush1.msra.mxu0 0.0
        %393 = vmatprep.subr.mxu0 0.0
        %394 = vmatpush1.msra.mxu0 0.0
        %395 = vmatprep.subr.mxu0 0.0
        %396 = vmatpush1.msra.mxu0 0.0
        %397 = vmatprep.subr.mxu0 0.0
        %398 = vmatpush1.msra.mxu0 0.0
        %399 = vmatprep.subr.mxu0 0.0
        %400 = vmatpush1.msra.mxu0 0.0
        %401 = vmatprep.subr.mxu0 0.0
        %402 = vmatpush1.msra.mxu0 0.0
        %403 = vmatprep.subr.mxu0 0.0
        %404 = vmatpush1.msra.mxu0 0.0
        %405 = vmatprep.subr.mxu0 0.0
        %406 = vmatpush1.msra.mxu0 0.0
        %407 = vmatprep.subr.mxu0 0.0
        %408 = vmatpush1.msra.mxu0 0.0
        %409 = vmatprep.subr.mxu0 0.0
        %410 = vmatpush1.msra.mxu0 0.0
        %411 = vmatprep.subr.mxu0 0.0
        %412 = vmatpush1.msra.mxu0 0.0
        %413 = vmatprep.subr.mxu0 0.0
        %414 = vmatpush1.msra.mxu0 0.0
        %415 = vmatprep.subr.mxu0 0.0
        %416 = vmatpush1.msra.mxu0 0.0
        %417 = vmatprep.subr.mxu0 0.0
        %418 = vmatpush1.msra.mxu0 0.0
        %419 = vmatprep.subr.mxu0 0.0
        %420 = vmatpush1.msra.mxu0 0.0
        %421 = vmatprep.subr.mxu0 0.0
        %422 = vmatpush1.msra.mxu0 0.0
        %423 = vmatprep.subr.mxu0 0.0
        %424 = vmatpush1.msra.mxu0 0.0
        %425 = vmatprep.subr.mxu0 0.0
        %426 = vmatpush1.msra.mxu0 0.0
        %427 = vmatprep.subr.mxu0 0.0
        %428 = vmatpush1.msra.mxu0 0.0
        %429 = vmatprep.subr.mxu0 0.0
        %430 = vmatpush1.msra.mxu0 0.0
        %431 = vmatprep.subr.mxu0 0.0
        %432 = vmatpush1.msra.mxu0 0.0
        %433 = vmatprep.subr.mxu0 0.0
        %434 = vmatpush1.msra.mxu0 0.0
        %435 = vmatprep.mubr.f32.mxu0 0.0
        %436 = vmatmul.mubr.f32.gmra.mrb[0].mxu0 %v355
        %v437 = vpop.f32.mrb[0].mxu0
        %v438 = vadd.f32 %v334, %v437
        %v439 = vpop.f32.mrb[0].mxu0
        %v440 = vadd.f32 %v334, %v439
        %441 = vmatprep.mubr.f32.mxu0 0.0
        %442 = vmatmul.mubr.f32.gmra.mrb[0].mxu0 %v358
        %v443 = vpop.f32.mrb[0].mxu0
        %v444 = vadd.f32 %v339, %v443
        %v445 = vpop.f32.mrb[0].mxu0
        %v446 = vadd.f32 %v339, %v445
        %447 = vmatprep.mubr.f32.mxu0 0.0
        %448 = vmatmul.mubr.f32.gmra.mrb[0].mxu0 %v361
        %v449 = vpop.f32.mrb[0].mxu0
        %v450 = vadd.f32 %v344, %v449
        %v451 = vpop.f32.mrb[0].mxu0
        %v452 = vadd.f32 %v344, %v451
        %453 = vmatprep.mubr.f32.mxu0 0.0
        %454 = vmatmul.mubr.f32.gmra.mrb[0].mxu0 %v364
        %v455 = vpop.f32.mrb[0].mxu0
        %v456 = vadd.f32 %v349, %v455
        %v457 = vpop.f32.mrb[0].mxu0
        %v458 = vadd.f32 %v349, %v457
        %459 = vdwg.mxu0
        %v460 = vmax.f32 %v438, 0.0
        %v461 = vmax.f32 %v440, 0.0
        %v462 = vmax.f32 %v444, 0.0
        %v463 = vmax.f32 %v446, 0.0
        %v464 = vmax.f32 %v450, 0.0
        %v465 = vmax.f32 %v452, 0.0
        %v466 = vmax.f32 %v456, 0.0
        %v467 = vmax.f32 %v458, 0.0
        %v468 = vld [vmem:[%s3] sm:$0xff]
        %v469 = vld [vmem:[%s3 + $0x8] sm:$0xff]
        %v470 = vld [vmem:[%s3 + $0x10] sm:$0xff]
        %v471 = vld [vmem:[%s3 + $0x18] sm:$0xff]
        %v472 = vld [vmem:[%s3 + $0x20] sm:$0xff]
        %v473 = vld [vmem:[%s3 + $0x28] sm:$0xff]
        %v474 = vld [vmem:[%s3 + $0x30] sm:$0xff]
        %v475 = vld [vmem:[%s3 + $0x38] sm:$0xff]
        %vm476 = vcmask 261120
        %v478 = vsel %vm476, %v468, 0
        %v481 = vsel %vm476, %v469, 0
        %v484 = vsel %vm476, %v470, 0
        %v487 = vsel %vm476, %v471, 0
        %v490 = vsel %vm476, %v472, 0
        %v493 = vsel %vm476, %v473, 0
        %v496 = vsel %vm476, %v474, 0
        %v499 = vsel %vm476, %v475, 0
        %501 = vmatprep.subr.mxu0 %v461
        %502 = vmatpush1.msra.mxu0 %v460
        %503 = vmatprep.subr.mxu0 %v463
        %504 = vmatpush1.msra.mxu0 %v462
        %505 = vmatprep.subr.mxu0 %v465
        %506 = vmatpush1.msra.mxu0 %v464
        %507 = vmatprep.subr.mxu0 %v467
        %508 = vmatpush1.msra.mxu0 %v466
        %509 = vmatprep.subr.mxu0 0.0
        %510 = vmatpush1.msra.mxu0 0.0
        %511 = vmatprep.subr.mxu0 0.0
        %512 = vmatpush1.msra.mxu0 0.0
        %513 = vmatprep.subr.mxu0 0.0
        %514 = vmatpush1.msra.mxu0 0.0
        %515 = vmatprep.subr.mxu0 0.0
        %516 = vmatpush1.msra.mxu0 0.0
        %517 = vmatprep.subr.mxu0 0.0
        %518 = vmatpush1.msra.mxu0 0.0
        %519 = vmatprep.subr.mxu0 0.0
        %520 = vmatpush1.msra.mxu0 0.0
        %521 = vmatprep.subr.mxu0 0.0
        %522 = vmatpush1.msra.mxu0 0.0
        %523 = vmatprep.subr.mxu0 0.0
        %524 = vmatpush1.msra.mxu0 0.0
        %525 = vmatprep.subr.mxu0 0.0
        %526 = vmatpush1.msra.mxu0 0.0
        %527 = vmatprep.subr.mxu0 0.0
        %528 = vmatpush1.msra.mxu0 0.0
        %529 = vmatprep.subr.mxu0 0.0
        %530 = vmatpush1.msra.mxu0 0.0
        %531 = vmatprep.subr.mxu0 0.0
        %532 = vmatpush1.msra.mxu0 0.0
        %533 = vmatprep.subr.mxu0 0.0
        %534 = vmatpush1.msra.mxu0 0.0
        %535 = vmatprep.subr.mxu0 0.0
        %536 = vmatpush1.msra.mxu0 0.0
        %537 = vmatprep.subr.mxu0 0.0
        %538 = vmatpush1.msra.mxu0 0.0
        %539 = vmatprep.subr.mxu0 0.0
        %540 = vmatpush1.msra.mxu0 0.0
        %541 = vmatprep.subr.mxu0 0.0
        %542 = vmatpush1.msra.mxu0 0.0
        %543 = vmatprep.subr.mxu0 0.0
        %544 = vmatpush1.msra.mxu0 0.0
        %545 = vmatprep.subr.mxu0 0.0
        %546 = vmatpush1.msra.mxu0 0.0
        %547 = vmatprep.subr.mxu0 0.0
        %548 = vmatpush1.msra.mxu0 0.0
        %549 = vmatprep.subr.mxu0 0.0
        %550 = vmatpush1.msra.mxu0 0.0
        %551 = vmatprep.subr.mxu0 0.0
        %552 = vmatpush1.msra.mxu0 0.0
        %553 = vmatprep.subr.mxu0 0.0
        %554 = vmatpush1.msra.mxu0 0.0
        %555 = vmatprep.subr.mxu0 0.0
        %556 = vmatpush1.msra.mxu0 0.0
        %557 = vmatprep.subr.mxu0 0.0
        %558 = vmatpush1.msra.mxu0 0.0
        %559 = vmatprep.subr.mxu0 0.0
        %560 = vmatpush1.msra.mxu0 0.0
        %561 = vmatprep.subr.mxu0 0.0
        %562 = vmatpush1.msra.mxu0 0.0
        %563 = vmatprep.subr.mxu0 0.0
        %564 = vmatpush1.msra.mxu0 0.0
        %565 = vmatprep.mubr.f32.mxu0 0.0
        %566 = vmatmul.mubr.f32.gmra.mrb[0].mxu0 %v478
        %v567 = vpop.f32.mrb[0].mxu0
        %v568 = vadd.f32 0.0, %v567
        %v569 = vpop.f32.mrb[0].mxu0
        %v570 = vadd.f32 0.0, %v569
        %571 = vmatprep.mubr.f32.mxu0 0.0
        %572 = vmatmul.mubr.f32.gmra.mrb[0].mxu0 %v481
        %v573 = vpop.f32.mrb[0].mxu0
        %v574 = vadd.f32 0.0, %v573
        %v575 = vpop.f32.mrb[0].mxu0
        %v576 = vadd.f32 0.0, %v575
        %577 = vmatprep.mubr.f32.mxu0 0.0
        %578 = vmatmul.mubr.f32.gmra.mrb[0].mxu0 %v484
        %v579 = vpop.f32.mrb[0].mxu0
        %v580 = vadd.f32 0.0, %v579
        %v581 = vpop.f32.mrb[0].mxu0
        %v582 = vadd.f32 0.0, %v581
        %583 = vmatprep.mubr.f32.mxu0 0.0
        %584 = vmatmul.mubr.f32.gmra.mrb[0].mxu0 %v487
        %v585 = vpop.f32.mrb[0].mxu0
        %v586 = vadd.f32 0.0, %v585
        %v587 = vpop.f32.mrb[0].mxu0
        %v588 = vadd.f32 0.0, %v587
        %589 = vmatprep.mubr.f32.mxu0 0.0
        %590 = vmatmul.mubr.f32.gmra.mrb[0].mxu0 %v490
        %v591 = vpop.f32.mrb[0].mxu0
        %v592 = vadd.f32 0.0, %v591
        %v593 = vpop.f32.mrb[0].mxu0
        %v594 = vadd.f32 0.0, %v593
        %595 = vmatprep.mubr.f32.mxu0 0.0
        %596 = vmatmul.mubr.f32.gmra.mrb[0].mxu0 %v493
        %v597 = vpop.f32.mrb[0].mxu0
        %v598 = vadd.f32 0.0, %v597
        %v599 = vpop.f32.mrb[0].mxu0
        %v600 = vadd.f32 0.0, %v599
        %601 = vmatprep.mubr.f32.mxu0 0.0
        %602 = vmatmul.mubr.f32.gmra.mrb[0].mxu0 %v496
        %v603 = vpop.f32.mrb[0].mxu0
        %v604 = vadd.f32 0.0, %v603
        %v605 = vpop.f32.mrb[0].mxu0
        %v606 = vadd.f32 0.0, %v605
        %607 = vmatprep.mubr.f32.mxu0 0.0
        %608 = vmatmul.mubr.f32.gmra.mrb[0].mxu0 %v499
        %v609 = vpop.f32.mrb[0].mxu0
        %v610 = vadd.f32 0.0, %v609
        %v611 = vpop.f32.mrb[0].mxu0
        %v612 = vadd.f32 0.0, %v611
        %613 = vdwg.mxu0
        %v614 = vmax.f32 %v568, %v580
        %v615 = vmax.f32 %v574, %v586
        %v616 = vmax.f32 %v614, %v592
        %v617 = vmax.f32 %v615, %v598
        %v618 = vmax.f32 %v616, %v604
        %v619 = vmax.f32 %v617, %v610
        %v620 = vmax.f32 %v618, %v619
        %v621 = vrot.slane %v620, 4
        %v622 = vmax.f32 %v620, %v621
        %v623 = vrot.slane %v622, 2
        %v624 = vmax.f32 %v622, %v623
        %v625 = vrot.slane %v624, 1
        %v626 = vmax.f32 %v624, %v625
        %v627 = vmax.f32 %v570, %v582
        %v628 = vmax.f32 %v576, %v588
        %v629 = vmax.f32 %v627, %v594
        %v630 = vmax.f32 %v628, %v600
        %v631 = vmax.f32 %v629, %v606
        %v632 = vmax.f32 %v630, %v612
        %v633 = vmax.f32 %v631, %v632
        %v634 = vrot.slane %v633, 4
        %v635 = vmax.f32 %v633, %v634
        %v636 = vrot.slane %v635, 2
        %v637 = vmax.f32 %v635, %v636
        %v638 = vrot.slane %v637, 1
        %v639 = vmax.f32 %v637, %v638
        %v640 = vsub.f32 %v568, %v626
        %v641 = vsub.f32 %v570, %v639
        %v642 = vsub.f32 %v574, %v626
        %v643 = vsub.f32 %v576, %v639
        %v644 = vsub.f32 %v580, %v626
        %v645 = vsub.f32 %v582, %v639
        %v646 = vsub.f32 %v586, %v626
        %v647 = vsub.f32 %v588, %v639
        %v648 = vsub.f32 %v592, %v626
        %v649 = vsub.f32 %v594, %v639
        %v650 = vsub.f32 %v598, %v626
        %v651 = vsub.f32 %v600, %v639
        %v652 = vsub.f32 %v604, %v626
        %v653 = vsub.f32 %v606, %v639
        %v654 = vsub.f32 %v610, %v626
        %v655 = vsub.f32 %v612, %v639
        %v656 = vmul.f32 %v640, 1.442695
        %v657 = vpow.pop %v656
        %v658 = vmul.f32 %v641, 1.442695
        %v659 = vpow.pop %v658
        %v660 = vmul.f32 %v642, 1.442695
        %v661 = vpow.pop %v660
        %v662 = vmul.f32 %v643, 1.442695
        %v663 = vpow.pop %v662
        %v664 = vmul.f32 %v644, 1.442695
        %v665 = vpow.pop %v664
        %v666 = vmul.f32 %v645, 1.442695
        %v667 = vpow.pop %v666
        %v668 = vmul.f32 %v646, 1.442695
        %v669 = vpow.pop %v668
        %v670 = vmul.f32 %v647, 1.442695
        %v671 = vpow.pop %v670
        %v672 = vmul.f32 %v648, 1.442695
        %v673 = vpow.pop %v672
        %v674 = vmul.f32 %v649, 1.442695
        %v675 = vpow.pop %v674
        %v676 = vmul.f32 %v650, 1.442695
        %v677 = vpow.pop %v676
        %v678 = vmul.f32 %v651, 1.442695
        %v679 = vpow.pop %v678
        %v680 = vmul.f32 %v652, 1.442695
        %v681 = vpow.pop %v680
        %v682 = vmul.f32 %v653, 1.442695
        %v683 = vpow.pop %v682
        %v684 = vmul.f32 %v654, 1.442695
        %v685 = vpow.pop %v684
        %v686 = vmul.f32 %v655, 1.442695
        %v687 = vpow.pop %v686
        %v688 = vadd.f32 %v657, %v661
        %v689 = vadd.f32 %v688, %v665
        %v690 = vadd.f32 %v689, %v669
        %v691 = vadd.f32 %v690, %v673
        %v692 = vadd.f32 %v691, %v677
        %v693 = vadd.f32 %v692, %v681
        %v694 = vadd.f32 %v693, %v685
        %v695 = vrot.slane %v694, 4
        %v696 = vadd.f32 %v694, %v695
        %v697 = vrot.slane %v696, 2
        %v698 = vadd.f32 %v696, %v697
        %v699 = vrot.slane %v698, 1
        %v700 = vadd.f32 %v698, %v699
        %v701 = vadd.f32 %v659, %v663
        %v702 = vadd.f32 %v701, %v667
        %v703 = vadd.f32 %v702, %v671
        %v704 = vadd.f32 %v703, %v675
        %v705 = vadd.f32 %v704, %v679
        %v706 = vadd.f32 %v705, %v683
        %v707 = vadd.f32 %v706, %v687
        %v708 = vrot.slane %v707, 4
        %v709 = vadd.f32 %v707, %v708
        %v710 = vrot.slane %v709, 2
        %v711 = vadd.f32 %v709, %v710
        %v712 = vrot.slane %v711, 1
        %v713 = vadd.f32 %v711, %v712
        %v714 = vrcp.pop %v700
        %v715 = vrcp.pop %v713
        %v716 = vmul.f32 %v657, %v714
        %v717 = vmul.f32 %v659, %v715
        %v718 = vmul.f32 %v661, %v714
        %v719 = vmul.f32 %v663, %v715
        %v720 = vmul.f32 %v665, %v714
        %v721 = vmul.f32 %v667, %v715
        %v722 = vmul.f32 %v669, %v714
        %v723 = vmul.f32 %v671, %v715
        %v724 = vmul.f32 %v673, %v714
        %v725 = vmul.f32 %v675, %v715
        %v726 = vmul.f32 %v677, %v714
        %v727 = vmul.f32 %v679, %v715
        %v728 = vmul.f32 %v681, %v714
        %v729 = vmul.f32 %v683, %v715
        %v730 = vmul.f32 %v685, %v714
        %v731 = vmul.f32 %v687, %v715
        %v732 = vsub.f32 %v716, 0.0025
        %v733 = vsub.f32 %v717, 0.0025
        %v734 = vsub.f32 %v718, 0.0025
        %v735 = vsub.f32 %v719, 0.0025
        %v736 = vsub.f32 %v720, 0.0025
        %v737 = vsub.f32 %v721, 0.0025
        %v738 = vsub.f32 %v722, 0.0025
        %v739 = vsub.f32 %v723, 0.0025
        %v740 = vsub.f32 %v724, 0.0025
        %v741 = vsub.f32 %v725, 0.0025
        %v742 = vsub.f32 %v726, 0.0025
        %v743 = vsub.f32 %v727, 0.0025
        %v744 = vsub.f32 %v728, 0.0025
        %v745 = vsub.f32 %v729, 0.0025
        %v746 = vsub.f32 %v730, 0.0025
        %v747 = vsub.f32 %v731, 0.0025
        %v748 = vmax.f32 %v732, 0.0
        %v749 = vmax.f32 %v733, 0.0
        %v750 = vmax.f32 %v734, 0.0
        %v751 = vmax.f32 %v735, 0.0
        %v752 = vmax.f32 %v736, 0.0
        %v753 = vmax.f32 %v737, 0.0
        %v754 = vmax.f32 %v738, 0.0
        %v755 = vmax.f32 %v739, 0.0
        %v756 = vmax.f32 %v740, 0.0
        %v757 = vmax.f32 %v741, 0.0
        %v758 = vmax.f32 %v742, 0.0
        %v759 = vmax.f32 %v743, 0.0
        %v760 = vmax.f32 %v744, 0.0
        %v761 = vmax.f32 %v745, 0.0
        %v762 = vmax.f32 %v746, 0.0
        %v763 = vmax.f32 %v747, 0.0
        %v764 = vmul.f32 %v748, %v716
        %v765 = vmul.f32 %v749, %v717
        %v766 = vmul.f32 %v750, %v718
        %v767 = vmul.f32 %v751, %v719
        %v768 = vmul.f32 %v752, %v720
        %v769 = vmul.f32 %v753, %v721
        %v770 = vmul.f32 %v754, %v722
        %v771 = vmul.f32 %v755, %v723
        %v772 = vmul.f32 %v756, %v724
        %v773 = vmul.f32 %v757, %v725
        %v774 = vmul.f32 %v758, %v726
        %v775 = vmul.f32 %v759, %v727
        %v776 = vmul.f32 %v760, %v728
        %v777 = vmul.f32 %v761, %v729
        %v778 = vmul.f32 %v762, %v730
        %v779 = vmul.f32 %v763, %v731
        %v780 = vand.u32 2147483647, %v732
        %v781 = vand.u32 2147483647, %v733
        %v782 = vand.u32 2147483647, %v734
        %v783 = vand.u32 2147483647, %v735
        %v784 = vand.u32 2147483647, %v736
        %v785 = vand.u32 2147483647, %v737
        %v786 = vand.u32 2147483647, %v738
        %v787 = vand.u32 2147483647, %v739
        %v788 = vand.u32 2147483647, %v740
        %v789 = vand.u32 2147483647, %v741
        %v790 = vand.u32 2147483647, %v742
        %v791 = vand.u32 2147483647, %v743
        %v792 = vand.u32 2147483647, %v744
        %v793 = vand.u32 2147483647, %v745
        %v794 = vand.u32 2147483647, %v746
        %v795 = vand.u32 2147483647, %v747
        %v796 = vadd.f32 %v780, 1e-12
        %v797 = vadd.f32 %v781, 1e-12
        %v798 = vadd.f32 %v782, 1e-12
        %v799 = vadd.f32 %v783, 1e-12
        %v800 = vadd.f32 %v784, 1e-12
        %v801 = vadd.f32 %v785, 1e-12
        %v802 = vadd.f32 %v786, 1e-12
        %v803 = vadd.f32 %v787, 1e-12
        %v804 = vadd.f32 %v788, 1e-12
        %v805 = vadd.f32 %v789, 1e-12
        %v806 = vadd.f32 %v790, 1e-12
        %v807 = vadd.f32 %v791, 1e-12
        %v808 = vadd.f32 %v792, 1e-12
        %v809 = vadd.f32 %v793, 1e-12
        %v810 = vadd.f32 %v794, 1e-12
        %v811 = vadd.f32 %v795, 1e-12
        %v812 = vrcp.pop %v796
        %v813 = vrcp.pop %v797
        %v814 = vrcp.pop %v798
        %v815 = vrcp.pop %v799
        %v816 = vrcp.pop %v800
        %v817 = vrcp.pop %v801
        %v818 = vrcp.pop %v802
        %v819 = vrcp.pop %v803
        %v820 = vrcp.pop %v804
        %v821 = vrcp.pop %v805
        %v822 = vrcp.pop %v806
        %v823 = vrcp.pop %v807
        %v824 = vrcp.pop %v808
        %v825 = vrcp.pop %v809
        %v826 = vrcp.pop %v810
        %v827 = vrcp.pop %v811
        %v828 = vmul.f32 %v764, %v812
        %v829 = vmul.f32 %v765, %v813
        %v830 = vmul.f32 %v766, %v814
        %v831 = vmul.f32 %v767, %v815
        %v832 = vmul.f32 %v768, %v816
        %v833 = vmul.f32 %v769, %v817
        %v834 = vmul.f32 %v770, %v818
        %v835 = vmul.f32 %v771, %v819
        %v836 = vmul.f32 %v772, %v820
        %v837 = vmul.f32 %v773, %v821
        %v838 = vmul.f32 %v774, %v822
        %v839 = vmul.f32 %v775, %v823
        %v840 = vmul.f32 %v776, %v824
        %v841 = vmul.f32 %v777, %v825
        %v842 = vmul.f32 %v778, %v826
        %v843 = vmul.f32 %v779, %v827
        %v844 = vand.u32 2147483647, %v828
        %v845 = vand.u32 2147483647, %v829
        %v846 = vand.u32 2147483647, %v830
        %v847 = vand.u32 2147483647, %v831
        %v848 = vand.u32 2147483647, %v832
        %v849 = vand.u32 2147483647, %v833
        %v850 = vand.u32 2147483647, %v834
        %v851 = vand.u32 2147483647, %v835
        %v852 = vand.u32 2147483647, %v836
        %v853 = vand.u32 2147483647, %v837
        %v854 = vand.u32 2147483647, %v838
        %v855 = vand.u32 2147483647, %v839
        %v856 = vand.u32 2147483647, %v840
        %v857 = vand.u32 2147483647, %v841
        %v858 = vand.u32 2147483647, %v842
        %v859 = vand.u32 2147483647, %v843
        %v860 = vadd.f32 %v844, %v846
        %v861 = vadd.f32 %v860, %v848
        %v862 = vadd.f32 %v861, %v850
        %v863 = vadd.f32 %v862, %v852
        %v864 = vadd.f32 %v863, %v854
        %v865 = vadd.f32 %v864, %v856
        %v866 = vadd.f32 %v865, %v858
        %v867 = vrot.slane %v866, 4
        %v868 = vadd.f32 %v866, %v867
        %v869 = vrot.slane %v868, 2
        %v870 = vadd.f32 %v868, %v869
        %v871 = vrot.slane %v870, 1
        %v872 = vadd.f32 %v870, %v871
        %v873 = vadd.f32 %v845, %v847
        %v874 = vadd.f32 %v873, %v849
        %v875 = vadd.f32 %v874, %v851
        %v876 = vadd.f32 %v875, %v853
        %v877 = vadd.f32 %v876, %v855
        %v878 = vadd.f32 %v877, %v857
        %v879 = vadd.f32 %v878, %v859
        %v880 = vrot.slane %v879, 4
        %v881 = vadd.f32 %v879, %v880
        %v882 = vrot.slane %v881, 2
        %v883 = vadd.f32 %v881, %v882
        %v884 = vrot.slane %v883, 1
        %v885 = vadd.f32 %v883, %v884
        %v886 = vmax.f32 %v872, 1e-12
        %v887 = vmax.f32 %v885, 1e-12
        %v888 = vrcp.pop %v886
        %v889 = vrcp.pop %v887
        %v890 = vmul.f32 %v828, %v888
        %v891 = vmul.f32 %v829, %v889
        %v892 = vmul.f32 %v830, %v888
        %v893 = vmul.f32 %v831, %v889
        %v894 = vmul.f32 %v832, %v888
        %v895 = vmul.f32 %v833, %v889
        %v896 = vmul.f32 %v834, %v888
        %v897 = vmul.f32 %v835, %v889
        %v898 = vmul.f32 %v836, %v888
        %v899 = vmul.f32 %v837, %v889
        %v900 = vmul.f32 %v838, %v888
        %v901 = vmul.f32 %v839, %v889
        %v902 = vmul.f32 %v840, %v888
        %v903 = vmul.f32 %v841, %v889
        %v904 = vmul.f32 %v842, %v888
        %v905 = vmul.f32 %v843, %v889
        %v906 = vld [vmem:[%s4] sm:$0xf]
        %v907 = vld [vmem:[%s5] sm:$0xf]
        %909 = vset.pattern.permute.xlu0 0
        %910 = vperm.xlu0 %909, %v907
        %v911 = vpop.permute.xlu0 %910
        %vm913 = vcmask 523264
        %v915 = vsel %vm913, %v906, 0
        %917 = vmatprep.subr.mxu0 %v891
        %918 = vmatpush1.msra.mxu0 %v890
        %919 = vmatprep.subr.mxu0 %v893
        %920 = vmatpush1.msra.mxu0 %v892
        %921 = vmatprep.subr.mxu0 %v895
        %922 = vmatpush1.msra.mxu0 %v894
        %923 = vmatprep.subr.mxu0 %v897
        %924 = vmatpush1.msra.mxu0 %v896
        %925 = vmatprep.subr.mxu0 %v899
        %926 = vmatpush1.msra.mxu0 %v898
        %927 = vmatprep.subr.mxu0 %v901
        %928 = vmatpush1.msra.mxu0 %v900
        %929 = vmatprep.subr.mxu0 %v903
        %930 = vmatpush1.msra.mxu0 %v902
        %931 = vmatprep.subr.mxu0 %v905
        %932 = vmatpush1.msra.mxu0 %v904
        %933 = vmatprep.subr.mxu0 0.0
        %934 = vmatpush1.msra.mxu0 0.0
        %935 = vmatprep.subr.mxu0 0.0
        %936 = vmatpush1.msra.mxu0 0.0
        %937 = vmatprep.subr.mxu0 0.0
        %938 = vmatpush1.msra.mxu0 0.0
        %939 = vmatprep.subr.mxu0 0.0
        %940 = vmatpush1.msra.mxu0 0.0
        %941 = vmatprep.subr.mxu0 0.0
        %942 = vmatpush1.msra.mxu0 0.0
        %943 = vmatprep.subr.mxu0 0.0
        %944 = vmatpush1.msra.mxu0 0.0
        %945 = vmatprep.subr.mxu0 0.0
        %946 = vmatpush1.msra.mxu0 0.0
        %947 = vmatprep.subr.mxu0 0.0
        %948 = vmatpush1.msra.mxu0 0.0
        %949 = vmatprep.subr.mxu0 0.0
        %950 = vmatpush1.msra.mxu0 0.0
        %951 = vmatprep.subr.mxu0 0.0
        %952 = vmatpush1.msra.mxu0 0.0
        %953 = vmatprep.subr.mxu0 0.0
        %954 = vmatpush1.msra.mxu0 0.0
        %955 = vmatprep.subr.mxu0 0.0
        %956 = vmatpush1.msra.mxu0 0.0
        %957 = vmatprep.subr.mxu0 0.0
        %958 = vmatpush1.msra.mxu0 0.0
        %959 = vmatprep.subr.mxu0 0.0
        %960 = vmatpush1.msra.mxu0 0.0
        %961 = vmatprep.subr.mxu0 0.0
        %962 = vmatpush1.msra.mxu0 0.0
        %963 = vmatprep.subr.mxu0 0.0
        %964 = vmatpush1.msra.mxu0 0.0
        %965 = vmatprep.subr.mxu0 0.0
        %966 = vmatpush1.msra.mxu0 0.0
        %967 = vmatprep.subr.mxu0 0.0
        %968 = vmatpush1.msra.mxu0 0.0
        %969 = vmatprep.subr.mxu0 0.0
        %970 = vmatpush1.msra.mxu0 0.0
        %971 = vmatprep.subr.mxu0 0.0
        %972 = vmatpush1.msra.mxu0 0.0
        %973 = vmatprep.subr.mxu0 0.0
        %974 = vmatpush1.msra.mxu0 0.0
        %975 = vmatprep.subr.mxu0 0.0
        %976 = vmatpush1.msra.mxu0 0.0
        %977 = vmatprep.subr.mxu0 0.0
        %978 = vmatpush1.msra.mxu0 0.0
        %979 = vmatprep.subr.mxu0 0.0
        %980 = vmatpush1.msra.mxu0 0.0
        %981 = vmatprep.mubr.f32.mxu0 0.0
        %982 = vmatmul.mubr.f32.gmra.mrb[0].mxu0 %v915
        %v983 = vpop.f32.mrb[0].mxu0
        %v984 = vadd.f32 %v911, %v983
        %v985 = vpop.f32.mrb[0].mxu0
        %v986 = vadd.f32 %v911, %v985
        %987 = vdwg.mxu0
        %v990 = vcombine.low %v984, %v986
        %992 = vst [vmem:[%s302] sm:$0xff] %v990
        %993 = vst [vmem:[%s309] sm:$0xff] %v890
        %994 = vst [vmem:[%s309 + $0x8] sm:$0xff] %v891
        %995 = vst [vmem:[%s309 + $0x10] sm:$0xff] %v892
        %996 = vst [vmem:[%s309 + $0x18] sm:$0xff] %v893
        %997 = vst [vmem:[%s309 + $0x20] sm:$0xff] %v894
        %998 = vst [vmem:[%s309 + $0x28] sm:$0xff] %v895
        %999 = vst [vmem:[%s309 + $0x30] sm:$0xff] %v896
        %1000 = vst [vmem:[%s309 + $0x38] sm:$0xff] %v897
        %1001 = vst [vmem:[%s309 + $0x40] sm:$0xff] %v898
        %1002 = vst [vmem:[%s309 + $0x48] sm:$0xff] %v899
        %1003 = vst [vmem:[%s309 + $0x50] sm:$0xff] %v900
        %1004 = vst [vmem:[%s309 + $0x58] sm:$0xff] %v901
        %1005 = vst [vmem:[%s309 + $0x60] sm:$0xff] %v902
        %1006 = vst [vmem:[%s309 + $0x68] sm:$0xff] %v903
        %1007 = vst [vmem:[%s309 + $0x70] sm:$0xff] %v904
        %1008 = vst [vmem:[%s309 + $0x78] sm:$0xff] %v905
        %s1009 = sand.u32 %s180, 1
        %s1010 = scalar_lea.sflag [#allocation3], %s1009
        %s1011 = sand.u32 %s180, 1
        %s1012 = smul.addr %s1011, 8
        %s1013 = scalar_lea.vmem [#allocation2], %s1012
        %s1014 = sand.u32 %s208, 1
        %s1015 = scalar_lea.sflag [#allocation5], %s1014
        %s1016 = sand.u32 %s208, 1
        %s1017 = smul.addr %s1016, 128
        %s1018 = scalar_lea.vmem [#allocation4], %s1017
        // Predicated region
        $region45: #{tpu_custom_call.1} parent=43 // pred_check
          %p1019 = pneg %p190
        $region46: #{tpu_custom_call.1} parent=43 // pred_check_branch
          %1021 = sbr.rel (%p1019) target = $region48
        $region47: #{tpu_custom_call.1} parent=43 // pred_region
          %s1022 = smul.u32 2, %s30
          %s1024 = ssub.s32 128, 128
          %1025 = vsyncadd %s1010, %s1024
          %s1026 = smul.addr %s29, 2
          %s1027 = sadd.s32 %s1022, %s1026
          %s1028 = smul.addr %s1027, 64
          %s1029 = scalar_lea.hbm %s6, %s1028
          %s1031 = sshll.u32 %s1013, 4
          %s1032 = int_to_ptr.vmem [resolvable:$true] %s1031
          %1034 = dma.vmem_to_hbm [thread:$0]  %s1032, 128, %s1029, %s1010
        $region48: #{tpu_custom_call.1} parent=43 // pred_fallthru
          _
        // Predicated region
        $region49: #{tpu_custom_call.1} parent=43 // pred_check
          %p1035 = pneg %p218
        $region50: #{tpu_custom_call.1} parent=43 // pred_check_branch
          %1037 = sbr.rel (%p1035) target = $region52
        $region51: #{tpu_custom_call.1} parent=43 // pred_region
          %s1038 = smul.u32 2, %s30
          %s1040 = ssub.s32 2048, 2048
          %1041 = vsyncadd %s1015, %s1040
          %s1042 = smul.addr %s29, 16
          %s1043 = sadd.s32 %s1038, %s1042
          %s1044 = smul.addr %s1043, 128
          %s1045 = scalar_lea.hbm %s7, %s1044
          %s1046 = sshll.u32 %s1018, 4
          %s1047 = int_to_ptr.vmem [resolvable:$true] %s1046
          %1052 = dma.vmem_to_hbm [thread:$0]  %s1047, 2048, %s1045, %s1015, 256, 256, 16
        $region52: #{tpu_custom_call.1} parent=43 // pred_fallthru
          _
      $region44: #{tpu_custom_call.1} parent=5 // pred_fallthru
        _
      %p1053 = scmp.le.s32.totalorder 2, %s20
      // Predicated region
      $region53: #{tpu_custom_call.1} parent=5 // pred_check
        %p1054 = pneg %p1053
      $region54: #{tpu_custom_call.1} parent=5 // pred_check_branch
        %1056 = sbr.rel (%p1054) target = $region56
      $region55: #{tpu_custom_call.1} parent=5 // pred_region
        %s1057 = ssub.s32 %s20, 2
        // Predicated region
        $region57: #{tpu_custom_call.1} parent=55 // pred_check
          %p1058 = pneg %p196
        $region58: #{tpu_custom_call.1} parent=55 // pred_check_branch
          %1060 = sbr.rel (%p1058) target = $region60
        $region59: #{tpu_custom_call.1} parent=55 // pred_region
          %s1061 = sand.u32 %s181, 1
          %s1062 = scalar_lea.sflag [#allocation3], %s1061
          %s1063 = sand.u32 %s181, 1
          %s1064 = smul.addr %s1063, 8
          %s1065 = scalar_lea.vmem [#allocation2], %s1064
          %1066 = dma.done %s1062, 128
        $region60: #{tpu_custom_call.1} parent=55 // pred_fallthru
          _
        // Predicated region
        $region61: #{tpu_custom_call.1} parent=55 // pred_check
          %p1067 = pneg %p224
        $region62: #{tpu_custom_call.1} parent=55 // pred_check_branch
          %1069 = sbr.rel (%p1067) target = $region64
        $region63: #{tpu_custom_call.1} parent=55 // pred_region
          %s1070 = sand.u32 %s209, 1
          %s1071 = scalar_lea.sflag [#allocation5], %s1070
          %s1072 = sand.u32 %s209, 1
          %s1073 = smul.addr %s1072, 128
          %s1074 = scalar_lea.vmem [#allocation4], %s1073
          %1075 = dma.done %s1071, 2048
        $region64: #{tpu_custom_call.1} parent=55 // pred_fallthru
          _
      $region56: #{tpu_custom_call.1} parent=5 // pred_fallthru
        _
    $region6: #{tpu_custom_call.1} parent=1 // loop_footer
      %s24 = sadd.s32 1, %s20
    $region7: #{tpu_custom_call.1} parent=1 // loop_footer_branch
      %19 = sbr.rel target = $region3
    $region8: #{tpu_custom_call.1} parent=1 // loop_exit
      _
    %1076 = vsyncpa [#allocation3], 1
    %s1077 = scalar_lea.sflag [#allocation3], 1
    %1078 = vsyncpa %s1077, 1
    %1079 = vsyncpa [#allocation5], 1
    %s1080 = scalar_lea.sflag [#allocation5], 1
    %1081 = vsyncpa %s1080, 1

</llo_original>
